<compile_context>
chip_gen: v7x
topology: tpu7x:2x2x1
jax: 0.10.0
libtpu: 0.0.40
codegen_flags: <defaults>
</compile_context>

<pallas_src>
import math

import jax
import jax.numpy as jnp
from jax.experimental import pallas as pl
from jax.experimental.pallas import tpu as pltpu

# ----------------------------- problem sizes -----------------------------
B, C, H, W = 2, 3, 16, 16          # NCHW images, 3 channels like CLIP
PATCH = 8
P = (H // PATCH) * (W // PATCH)    # patches per image = 4
PATCH_DIM = C * PATCH * PATCH      # 192
CHW = C * H * W                    # 768 (= 6 * 128 lanes)
EMBED = 128                        # joint (image/text) embedding dim
CTX_DIM = 128                      # text "transformer width"
N_CLS = 4                          # number of classnames
N_CTX = 4                          # learnable context tokens
SUFFIX_LEN = 3                     # class-name + EOT tokens kept in suffix
SEQ = 1 + N_CTX + SUFFIX_LEN       # prompt sequence length = 8

M_PAD = 8                          # image rows padded to one clean sublane tile
N_PAD = 128                        # class columns padded to one lane-dense tile

MU = (0.48145466, 0.4578275, 0.40821073)
STD = (0.26862954, 0.26130258, 0.27577711)


def _vmem():
    return pl.BlockSpec(memory_space=pltpu.MemorySpace.VMEM)


def _smem():
    return pl.BlockSpec(memory_space=pltpu.MemorySpace.SMEM)


# --------------------- fused forward kernel ---------------------
def fused_clip_kernel(scale_ref, x_ref, w_img_ref, b_img_ref, ctx_ref,
                      txt_const_ref, w_text_ref, o_ref):
    # Image encoder. Normalization, patch layout and the 1/P mean-pool are
    # folded into w_img / b_img, so this is a single MXU pass.
    img = jnp.dot(x_ref[...], w_img_ref[...],
                  preferred_element_type=jnp.float32) + b_img_ref[...]     # (M_PAD, EMBED)

    # Text encoder: linear token mean-pool over [prefix, ctx, suffix].
    ctx_sum = jnp.sum(ctx_ref[...], axis=0, keepdims=True)                 # (1, CTX_DIM)
    pooled_txt = (txt_const_ref[...] + ctx_sum) * (1.0 / SEQ)              # (N_PAD, CTX_DIM)
    txt = jnp.dot(pooled_txt, w_text_ref[...],
                  preferred_element_type=jnp.float32)                      # (N_PAD, EMBED)

    # L2 normalize via rsqrt (EUP slot); tiny clamp guards padded/degenerate rows.
    img_n = img * jax.lax.rsqrt(
        jnp.maximum(jnp.sum(img * img, axis=-1, keepdims=True), 1e-30))
    txt_n = txt * jax.lax.rsqrt(
        jnp.maximum(jnp.sum(txt * txt, axis=-1, keepdims=True), 1e-30))

    # logits = exp(logit_scale) * img_n @ txt_n.T  -> lane-dense (M_PAD, N_PAD)
    sim = jax.lax.dot_general(img_n, txt_n, (((1,), (1,)), ((), ())),
                              preferred_element_type=jnp.float32)
    o_ref[...] = scale_ref[0] * sim


# --------------------- one-time parameter preparation ---------------------
def prepare_params(params):
    """Fold ImageNormalizer + patch extraction + mean-pool into the image
    projection, pre-sum the fixed prompt buffers, precompute exp(logit_scale)."""
    mean = jnp.asarray(MU, jnp.float32)
    std = jnp.asarray(STD, jnp.float32)

    # W_full[c, h, w, e] = w_patch[(c, h % PATCH, w % PATCH), e]
    w3 = params["w_patch"].reshape(C, PATCH, PATCH, EMBED)
    w_full = jnp.tile(w3, (1, H // PATCH, W // PATCH, 1))          # (C, H, W, EMBED)
    inv = 1.0 / (P * std)                                          # (C,) folds 1/P and 1/std
    w_img = (w_full * inv[:, None, None, None]).reshape(CHW, EMBED)
    b_img = -jnp.einsum("chwe,c->e", w_full, mean * inv)[None, :]  # (1, EMBED)

    # PromptLearner fixed part: prefix token + summed suffix tokens per class,
    # zero-padded to a lane-dense 128-class tile.
    txt_const = (params["token_prefix"][:, 0, :]
                 + jnp.sum(params["token_suffix"], axis=1))        # (N_CLS, CTX_DIM)
    txt_const = jnp.pad(txt_const, ((0, N_PAD - N_CLS), (0, 0)))

    return {
        "w_img": w_img.astype(jnp.float32),
        "b_img": b_img.astype(jnp.float32),
        "ctx": params["ctx"].astype(jnp.float32),
        "txt_const": txt_const.astype(jnp.float32),
        "w_text": params["w_text"].astype(jnp.float32),
        "scale_exp": jnp.exp(params["logit_scale"]).astype(jnp.float32),   # (1,)
    }


# --------------------- full forward (ClipTestTimeTuning.inference) ---------------------
@jax.jit
def clip_ttt_forward(image, prep):
    x_flat = image.astype(jnp.float32).reshape(B, CHW)     # free, layout-preserving
    x_pad = jnp.pad(x_flat, ((0, M_PAD - B), (0, 0)))      # pad M to a full sublane tile
    out = pl.pallas_call(
        fused_clip_kernel,
        out_shape=jax.ShapeDtypeStruct((M_PAD, N_PAD), jnp.float32),
        in_specs=[_smem(), _vmem(), _vmem(), _vmem(), _vmem(), _vmem(), _vmem()],
        out_specs=_vmem(),
    )(prep["scale_exp"], x_pad, prep["w_img"], prep["b_img"], prep["ctx"],
      prep["txt_const"], prep["w_text"])
    return out[:B, :N_CLS]


# --------------------- synthetic module parameters ---------------------
def init_params(key):
    ks = jax.random.split(key, 6)
    return {
        # synthetic visual patch-embedding / projection weights
        "w_patch": 0.02 * jax.random.normal(ks[0], (PATCH_DIM, EMBED), jnp.float32),
        # PromptLearner: nn.init.normal_(ctx_vectors, std=0.02)
        "ctx": 0.02 * jax.random.normal(ks[1], (N_CTX, CTX_DIM), jnp.float32),
        # token_prefix = embedding[:, :1, :], token_suffix = embedding[:, 1+n_ctx:, :]
        "token_prefix": 0.02 * jax.random.normal(ks[2], (N_CLS, 1, CTX_DIM), jnp.float32),
        "token_suffix": 0.02 * jax.random.normal(ks[3], (N_CLS, SUFFIX_LEN, CTX_DIM), jnp.float32),
        # synthetic text projection
        "w_text": 0.02 * jax.random.normal(ks[4], (CTX_DIM, EMBED), jnp.float32),
        # CLIP default logit_scale = ln(1/0.07)
        "logit_scale": jnp.asarray([math.log(1.0 / 0.07)], jnp.float32),
    }


# --------------------- pure-JAX reference (unfused algebra) ---------------------
def reference_forward(image, params):
    mean = jnp.asarray(MU, jnp.float32).reshape(1, C, 1, 1)
    std = jnp.asarray(STD, jnp.float32).reshape(1, C, 1, 1)
    xn = (image.astype(jnp.float32) - mean) / std
    x6 = xn.reshape(B, C, H // PATCH, PATCH, W // PATCH, PATCH)
    patches = x6.transpose(0, 2, 4, 1, 3, 5).reshape(B, P, PATCH_DIM)
    img = jnp.mean(patches, axis=1) @ params["w_patch"]
    ctx = jnp.broadcast_to(params["ctx"][None], (N_CLS, N_CTX, CTX_DIM))
    prompts = jnp.concatenate([params["token_prefix"], ctx, params["token_suffix"]], axis=1)
    txt = jnp.mean(prompts, axis=1) @ params["w_text"]
    img_n = img / jnp.linalg.norm(img, axis=-1, keepdims=True)
    txt_n = txt / jnp.linalg.norm(txt, axis=-1, keepdims=True)
    return jnp.exp(params["logit_scale"][0]) * (img_n @ txt_n.T)


if __name__ == "__main__":
    key = jax.random.PRNGKey(0)
    pkey, ikey = jax.random.split(key)
    params = init_params(pkey)
    prep = prepare_params(params)
    image = jax.random.uniform(ikey, (B, C, H, W), jnp.float32)   # NCHW, [0,1) pixels

    logits = clip_ttt_forward(image, prep)
    jax.block_until_ready(logits)
    assert logits.shape == (B, N_CLS) and logits.dtype == jnp.float32

    ref = reference_forward(image, params)
    assert jnp.allclose(logits, ref, rtol=2e-3, atol=2e-3), (logits, ref)
    print("KERNEL_OK")
</pallas_src>

<mosaic_0001>
module attributes {stable_mosaic.version = 11 : i64} {
  func.func @fused_clip_kernel(%arg0: memref<1xf32, #tpu.memory_space<smem>>, %arg1: memref<8x768xf32, #tpu.memory_space<vmem>>, %arg2: memref<768x128xf32, #tpu.memory_space<vmem>>, %arg3: memref<1x128xf32, #tpu.memory_space<vmem>>, %arg4: memref<4x128xf32, #tpu.memory_space<vmem>>, %arg5: memref<128x128xf32, #tpu.memory_space<vmem>>, %arg6: memref<128x128xf32, #tpu.memory_space<vmem>>, %arg7: memref<8x128xf32, #tpu.memory_space<vmem>>) attributes {dimension_semantics = [], scalar_prefetch = 0 : i64, scratch_operands = 0 : i64, tpu.core_type = #tpu.core_type<tc>} {
    %c0 = arith.constant 0 : index
    %c0_0 = arith.constant 0 : index
    %0 = vector.load %arg1[%c0, %c0_0] : memref<8x768xf32, #tpu.memory_space<vmem>>, vector<8x768xf32>
    %c0_1 = arith.constant 0 : index
    %c0_2 = arith.constant 0 : index
    %1 = vector.load %arg2[%c0_1, %c0_2] : memref<768x128xf32, #tpu.memory_space<vmem>>, vector<768x128xf32>
    %cst = arith.constant dense<0.000000e+00> : vector<8x128xf32>
    %2 = tpu.matmul %0, %1, %cst {dimension_numbers = #tpu.dot_dimension_numbers<[1], [0], [0], [1], [0, 0, 1, 1], [], []>} : vector<8x768xf32>, vector<768x128xf32>, vector<8x128xf32> -> vector<8x128xf32>
    %c0_3 = arith.constant 0 : index
    %c0_4 = arith.constant 0 : index
    %3 = vector.load %arg3[%c0_3, %c0_4] : memref<1x128xf32, #tpu.memory_space<vmem>>, vector<1x128xf32>
    %4 = vector.broadcast %3 : vector<1x128xf32> to vector<8x128xf32>
    %5 = arith.addf %2, %4 : vector<8x128xf32>
    %c0_5 = arith.constant 0 : index
    %c0_6 = arith.constant 0 : index
    %6 = vector.load %arg4[%c0_5, %c0_6] : memref<4x128xf32, #tpu.memory_space<vmem>>, vector<4x128xf32>
    %cst_7 = arith.constant dense<0.000000e+00> : vector<128xf32>
    %7 = vector.multi_reduction <add>, %6, %cst_7 [0] : vector<4x128xf32> to vector<128xf32>
    %8 = vector.shape_cast %7 : vector<128xf32> to vector<1x128xf32>
    %c0_8 = arith.constant 0 : index
    %c0_9 = arith.constant 0 : index
    %9 = vector.load %arg5[%c0_8, %c0_9] : memref<128x128xf32, #tpu.memory_space<vmem>>, vector<128x128xf32>
    %10 = vector.broadcast %8 : vector<1x128xf32> to vector<128x128xf32>
    %11 = arith.addf %9, %10 : vector<128x128xf32>
    %cst_10 = arith.constant 1.250000e-01 : f32
    %12 = vector.broadcast %cst_10 : f32 to vector<128x128xf32>
    %13 = arith.mulf %11, %12 : vector<128x128xf32>
    %c0_11 = arith.constant 0 : index
    %c0_12 = arith.constant 0 : index
    %14 = vector.load %arg6[%c0_11, %c0_12] : memref<128x128xf32, #tpu.memory_space<vmem>>, vector<128x128xf32>
    %cst_13 = arith.constant dense<0.000000e+00> : vector<128x128xf32>
    %15 = tpu.matmul %13, %14, %cst_13 {dimension_numbers = #tpu.dot_dimension_numbers<[1], [0], [0], [1], [0, 0, 1, 1], [], []>} : vector<128x128xf32>, vector<128x128xf32>, vector<128x128xf32> -> vector<128x128xf32>
    %16 = arith.mulf %5, %5 : vector<8x128xf32>
    %cst_14 = arith.constant dense<0.000000e+00> : vector<8xf32>
    %17 = vector.multi_reduction <add>, %16, %cst_14 [1] : vector<8x128xf32> to vector<8xf32>
    %18 = vector.shape_cast %17 : vector<8xf32> to vector<8x1xf32>
    %cst_15 = arith.constant 1.000000e-30 : f32
    %19 = vector.broadcast %cst_15 : f32 to vector<8x1xf32>
    %20 = arith.maximumf %18, %19 : vector<8x1xf32>
    %21 = math.rsqrt %20 : vector<8x1xf32>
    %22 = vector.broadcast %21 : vector<8x1xf32> to vector<8x128xf32>
    %23 = arith.mulf %5, %22 : vector<8x128xf32>
    %24 = arith.mulf %15, %15 : vector<128x128xf32>
    %cst_16 = arith.constant dense<0.000000e+00> : vector<128xf32>
    %25 = vector.multi_reduction <add>, %24, %cst_16 [1] : vector<128x128xf32> to vector<128xf32>
    %26 = vector.shape_cast %25 : vector<128xf32> to vector<128x1xf32>
    %cst_17 = arith.constant 1.000000e-30 : f32
    %27 = vector.broadcast %cst_17 : f32 to vector<128x1xf32>
    %28 = arith.maximumf %26, %27 : vector<128x1xf32>
    %29 = math.rsqrt %28 : vector<128x1xf32>
    %30 = vector.broadcast %29 : vector<128x1xf32> to vector<128x128xf32>
    %31 = arith.mulf %15, %30 : vector<128x128xf32>
    %cst_18 = arith.constant dense<0.000000e+00> : vector<8x128xf32>
    %32 = tpu.matmul %23, %31, %cst_18 {dimension_numbers = #tpu.dot_dimension_numbers<[1], [1], [0], [0], [0, 0, 1, 0], [], []>} : vector<8x128xf32>, vector<128x128xf32>, vector<8x128xf32> -> vector<8x128xf32>
    %c0_19 = arith.constant 0 : index
    %33 = memref.load %arg0[%c0_19] : memref<1xf32, #tpu.memory_space<smem>>
    %34 = vector.broadcast %33 : f32 to vector<8x128xf32>
    %35 = arith.mulf %34, %32 : vector<8x128xf32>
    %c0_20 = arith.constant 0 : index
    %c0_21 = arith.constant 0 : index
    %36 = vector.load %arg7[%c0_20, %c0_21] : memref<8x128xf32, #tpu.memory_space<vmem>>, vector<8x128xf32>
    tpu.vector_store %arg7[%c0_20, %c0_21], %35 {strides = array<i32>} : memref<8x128xf32, #tpu.memory_space<vmem>>, vector<8x128xf32>,
    return
  }
}

</mosaic_0001>

<llo_original>
// kernel: clip_ttt_forward.1
$region0: #{clip_ttt_forward.1}
  #allocation0 [shape = 'u32[]', space=smem, size = 0x4, offset = 0x4, fixed_abs, tag = 'smem constant byte address 0x4 - core index']
  #allocation1 [shape = 'u32[144,128]{1,0:T(1,128)}', space=vmem, size = 0x12000, scoped, tag = 'internal scratch']
  #allocation2 [shape = 'f32[1]{0:T(128)S(6)}', space=smem, size = 0x200, scoped, tag = 'scoped memory for clip_ttt_forward.1']
  %s0 = inlined_call_operand.<no memory space> [shape: f32[1], index: 0, kind: input, shape index: {}]
  %s1 = inlined_call_operand.vmem [shape: f32[8,768], index: 1, kind: input, shape index: {}]
  %s2 = inlined_call_operand.hbm [shape: f32[768,128], index: 2, kind: input, shape index: {}]
  %s3 = inlined_call_operand.vmem [shape: f32[1,128], index: 3, kind: input, shape index: {}]
  %s4 = inlined_call_operand.vmem [shape: f32[4,128], index: 4, kind: input, shape index: {}]
  %s5 = inlined_call_operand.vmem [shape: f32[128,128], index: 5, kind: input, shape index: {}]
  %s6 = inlined_call_operand.hbm [shape: f32[128,128], index: 6, kind: input, shape index: {}]
  %s7 = inlined_call_operand.vmem [shape: f32[8,128], index: 7, kind: output, shape index: {}]
  %s8 = sld [smem:[#allocation0]]
  $region46: #{clip_ttt_forward.1} parent=0
    _
  %s10 = ssub.s32 1, %s8
  %s11 = scalar_select 0, %s10, %s8
  %12 = sst [smem:[#allocation2]] %s0
  $region1: #{clip_ttt_forward.1} parent=0
    #allocation3 [shape = 'u8[393216]{0}', space=vmem, size = 0x60000, scoped, tag = 'input window, operand 2, single buffered']
    #allocation4 [shape = 's32[1]{0}', space=sflag, size = 0x4, scoped, tag = 'scoped memory for clip_ttt_forward.1']
    #allocation5 [shape = 'u8[65536]{0}', space=vmem, size = 0x10000, scoped, tag = 'input window, operand 6, single buffered']
    #allocation6 [shape = 's32[1]{0}', space=sflag, size = 0x4, scoped, tag = 'scoped memory for clip_ttt_forward.1']
    %13 = vsyncpa [#allocation4], 0
    %14 = vsyncpa [#allocation6], 0
    // Predicated region
    $region2: #{clip_ttt_forward.1} parent=1 // pred_check
      _
    $region3: #{clip_ttt_forward.1} parent=1 // pred_check_branch
      %16 = sbr.rel (0) target = $region5
    $region4: #{clip_ttt_forward.1} parent=1 // pred_region
      _
    $region5: #{clip_ttt_forward.1} parent=1 // pred_fallthru
      _
    // Predicated region
    $region6: #{clip_ttt_forward.1} parent=1 // pred_check
      _
    $region7: #{clip_ttt_forward.1} parent=1 // pred_check_branch
      %18 = sbr.rel (0) target = $region9
    $region8: #{clip_ttt_forward.1} parent=1 // pred_region
      _
    $region9: #{clip_ttt_forward.1} parent=1 // pred_fallthru
      _
    // Predicated region
    $region10: #{clip_ttt_forward.1} parent=1 // pred_check
      _
    $region11: #{clip_ttt_forward.1} parent=1 // pred_check_branch
      %20 = sbr.rel (0) target = $region13
    $region12: #{clip_ttt_forward.1} parent=1 // pred_region
      %s22 = ssub.s32 12288, 12288
      %23 = vsyncadd [#allocation4], %s22
      %s24 = sshll.u32 [#allocation3], 4
      %s25 = int_to_ptr.vmem [resolvable:$true] %s24
      %30 = dma.hbm_to_vmem [thread:$0]  %s2, 12288, %s25, [#allocation4], 128, 128, 8
    $region13: #{clip_ttt_forward.1} parent=1 // pred_fallthru
      _
    // Predicated region
    $region14: #{clip_ttt_forward.1} parent=1 // pred_check
      _
    $region15: #{clip_ttt_forward.1} parent=1 // pred_check_branch
      %32 = sbr.rel (0) target = $region17
    $region16: #{clip_ttt_forward.1} parent=1 // pred_region
      _
    $region17: #{clip_ttt_forward.1} parent=1 // pred_fallthru
      _
    // Predicated region
    $region18: #{clip_ttt_forward.1} parent=1 // pred_check
      _
    $region19: #{clip_ttt_forward.1} parent=1 // pred_check_branch
      %34 = sbr.rel (0) target = $region21
    $region20: #{clip_ttt_forward.1} parent=1 // pred_region
      _
    $region21: #{clip_ttt_forward.1} parent=1 // pred_fallthru
      _
    // Predicated region
    $region22: #{clip_ttt_forward.1} parent=1 // pred_check
      _
    $region23: #{clip_ttt_forward.1} parent=1 // pred_check_branch
      %36 = sbr.rel (0) target = $region25
    $region24: #{clip_ttt_forward.1} parent=1 // pred_region
      _
    $region25: #{clip_ttt_forward.1} parent=1 // pred_fallthru
      _
    // Predicated region
    $region26: #{clip_ttt_forward.1} parent=1 // pred_check
      _
    $region27: #{clip_ttt_forward.1} parent=1 // pred_check_branch
      %38 = sbr.rel (0) target = $region29
    $region28: #{clip_ttt_forward.1} parent=1 // pred_region
      %s40 = ssub.s32 2048, 2048
      %41 = vsyncadd [#allocation6], %s40
      %s42 = sshll.u32 [#allocation5], 4
      %s43 = int_to_ptr.vmem [resolvable:$true] %s42
      %48 = dma.hbm_to_vmem [thread:$0]  %s6, 2048, %s43, [#allocation6], 128, 128, 8
    $region29: #{clip_ttt_forward.1} parent=1 // pred_fallthru
      _
    // Predicated region
    $region30: #{clip_ttt_forward.1} parent=1 // pred_check
      _
    $region31: #{clip_ttt_forward.1} parent=1 // pred_check_branch
      %50 = sbr.rel (0) target = $region33
    $region32: #{clip_ttt_forward.1} parent=1 // pred_region
      %51 = dma.done [#allocation4], 12288
    $region33: #{clip_ttt_forward.1} parent=1 // pred_fallthru
      _
    // Predicated region
    $region34: #{clip_ttt_forward.1} parent=1 // pred_check
      _
    $region35: #{clip_ttt_forward.1} parent=1 // pred_check_branch
      %53 = sbr.rel (0) target = $region37
    $region36: #{clip_ttt_forward.1} parent=1 // pred_region
      %54 = dma.done [#allocation6], 2048
    $region37: #{clip_ttt_forward.1} parent=1 // pred_fallthru
      _
    %v55 = vld [vmem:[%s1] sm:$0xff]
    %v56 = vld [vmem:[%s1 + $0x8] sm:$0xff]
    %v57 = vld [vmem:[%s1 + $0x10] sm:$0xff]
    %v58 = vld [vmem:[%s1 + $0x18] sm:$0xff]
    %v59 = vld [vmem:[%s1 + $0x20] sm:$0xff]
    %v60 = vld [vmem:[%s1 + $0x28] sm:$0xff]
    %v61 = vld [vmem:[#allocation3] sm:$0xff]
    %v62 = vld [vmem:[#allocation3 + $0x8] sm:$0xff]
    %v63 = vld [vmem:[#allocation3 + $0x10] sm:$0xff]
    %v64 = vld [vmem:[#allocation3 + $0x18] sm:$0xff]
    %v65 = vld [vmem:[#allocation3 + $0x20] sm:$0xff]
    %v66 = vld [vmem:[#allocation3 + $0x28] sm:$0xff]
    %v67 = vld [vmem:[#allocation3 + $0x30] sm:$0xff]
    %v68 = vld [vmem:[#allocation3 + $0x38] sm:$0xff]
    %v69 = vld [vmem:[#allocation3 + $0x40] sm:$0xff]
    %v70 = vld [vmem:[#allocation3 + $0x48] sm:$0xff]
    %v71 = vld [vmem:[#allocation3 + $0x50] sm:$0xff]
    %v72 = vld [vmem:[#allocation3 + $0x58] sm:$0xff]
    %v73 = vld [vmem:[#allocation3 + $0x60] sm:$0xff]
    %v74 = vld [vmem:[#allocation3 + $0x68] sm:$0xff]
    %v75 = vld [vmem:[#allocation3 + $0x70] sm:$0xff]
    %v76 = vld [vmem:[#allocation3 + $0x78] sm:$0xff]
    %v77 = vld [vmem:[#allocation3 + $0x80] sm:$0xff]
    %v78 = vld [vmem:[#allocation3 + $0x88] sm:$0xff]
    %v79 = vld [vmem:[#allocation3 + $0x90] sm:$0xff]
    %v80 = vld [vmem:[#allocation3 + $0x98] sm:$0xff]
    %v81 = vld [vmem:[#allocation3 + $0xa0] sm:$0xff]
    %v82 = vld [vmem:[#allocation3 + $0xa8] sm:$0xff]
    %v83 = vld [vmem:[#allocation3 + $0xb0] sm:$0xff]
    %v84 = vld [vmem:[#allocation3 + $0xb8] sm:$0xff]
    %v85 = vld [vmem:[#allocation3 + $0xc0] sm:$0xff]
    %v86 = vld [vmem:[#allocation3 + $0xc8] sm:$0xff]
    %v87 = vld [vmem:[#allocation3 + $0xd0] sm:$0xff]
    %v88 = vld [vmem:[#allocation3 + $0xd8] sm:$0xff]
    %v89 = vld [vmem:[#allocation3 + $0xe0] sm:$0xff]
    %v90 = vld [vmem:[#allocation3 + $0xe8] sm:$0xff]
    %v91 = vld [vmem:[#allocation3 + $0xf0] sm:$0xff]
    %v92 = vld [vmem:[#allocation3 + $0xf8] sm:$0xff]
    %v93 = vld [vmem:[#allocation3 + $0x100] sm:$0xff]
    %v94 = vld [vmem:[#allocation3 + $0x108] sm:$0xff]
    %v95 = vld [vmem:[#allocation3 + $0x110] sm:$0xff]
    %v96 = vld [vmem:[#allocation3 + $0x118] sm:$0xff]
    %v97 = vld [vmem:[#allocation3 + $0x120] sm:$0xff]
    %v98 = vld [vmem:[#allocation3 + $0x128] sm:$0xff]
    %v99 = vld [vmem:[#allocation3 + $0x130] sm:$0xff]
    %v100 = vld [vmem:[#allocation3 + $0x138] sm:$0xff]
    %v101 = vld [vmem:[#allocation3 + $0x140] sm:$0xff]
    %v102 = vld [vmem:[#allocation3 + $0x148] sm:$0xff]
    %v103 = vld [vmem:[#allocation3 + $0x150] sm:$0xff]
    %v104 = vld [vmem:[#allocation3 + $0x158] sm:$0xff]
    %v105 = vld [vmem:[#allocation3 + $0x160] sm:$0xff]
    %v106 = vld [vmem:[#allocation3 + $0x168] sm:$0xff]
    %v107 = vld [vmem:[#allocation3 + $0x170] sm:$0xff]
    %v108 = vld [vmem:[#allocation3 + $0x178] sm:$0xff]
    %v109 = vld [vmem:[#allocation3 + $0x180] sm:$0xff]
    %v110 = vld [vmem:[#allocation3 + $0x188] sm:$0xff]
    %v111 = vld [vmem:[#allocation3 + $0x190] sm:$0xff]
    %v112 = vld [vmem:[#allocation3 + $0x198] sm:$0xff]
    %v113 = vld [vmem:[#allocation3 + $0x1a0] sm:$0xff]
    %v114 = vld [vmem:[#allocation3 + $0x1a8] sm:$0xff]
    %v115 = vld [vmem:[#allocation3 + $0x1b0] sm:$0xff]
    %v116 = vld [vmem:[#allocation3 + $0x1b8] sm:$0xff]
    %v117 = vld [vmem:[#allocation3 + $0x1c0] sm:$0xff]
    %v118 = vld [vmem:[#allocation3 + $0x1c8] sm:$0xff]
    %v119 = vld [vmem:[#allocation3 + $0x1d0] sm:$0xff]
    %v120 = vld [vmem:[#allocation3 + $0x1d8] sm:$0xff]
    %v121 = vld [vmem:[#allocation3 + $0x1e0] sm:$0xff]
    %v122 = vld [vmem:[#allocation3 + $0x1e8] sm:$0xff]
    %v123 = vld [vmem:[#allocation3 + $0x1f0] sm:$0xff]
    %v124 = vld [vmem:[#allocation3 + $0x1f8] sm:$0xff]
    %v125 = vld [vmem:[#allocation3 + $0x200] sm:$0xff]
    %v126 = vld [vmem:[#allocation3 + $0x208] sm:$0xff]
    %v127 = vld [vmem:[#allocation3 + $0x210] sm:$0xff]
    %v128 = vld [vmem:[#allocation3 + $0x218] sm:$0xff]
    %v129 = vld [vmem:[#allocation3 + $0x220] sm:$0xff]
    %v130 = vld [vmem:[#allocation3 + $0x228] sm:$0xff]
    %v131 = vld [vmem:[#allocation3 + $0x230] sm:$0xff]
    %v132 = vld [vmem:[#allocation3 + $0x238] sm:$0xff]
    %v133 = vld [vmem:[#allocation3 + $0x240] sm:$0xff]
    %v134 = vld [vmem:[#allocation3 + $0x248] sm:$0xff]
    %v135 = vld [vmem:[#allocation3 + $0x250] sm:$0xff]
    %v136 = vld [vmem:[#allocation3 + $0x258] sm:$0xff]
    %v137 = vld [vmem:[#allocation3 + $0x260] sm:$0xff]
    %v138 = vld [vmem:[#allocation3 + $0x268] sm:$0xff]
    %v139 = vld [vmem:[#allocation3 + $0x270] sm:$0xff]
    %v140 = vld [vmem:[#allocation3 + $0x278] sm:$0xff]
    %v141 = vld [vmem:[#allocation3 + $0x280] sm:$0xff]
    %v142 = vld [vmem:[#allocation3 + $0x288] sm:$0xff]
    %v143 = vld [vmem:[#allocation3 + $0x290] sm:$0xff]
    %v144 = vld [vmem:[#allocation3 + $0x298] sm:$0xff]
    %v145 = vld [vmem:[#allocation3 + $0x2a0] sm:$0xff]
    %v146 = vld [vmem:[#allocation3 + $0x2a8] sm:$0xff]
    %v147 = vld [vmem:[#allocation3 + $0x2b0] sm:$0xff]
    %v148 = vld [vmem:[#allocation3 + $0x2b8] sm:$0xff]
    %v149 = vld [vmem:[#allocation3 + $0x2c0] sm:$0xff]
    %v150 = vld [vmem:[#allocation3 + $0x2c8] sm:$0xff]
    %v151 = vld [vmem:[#allocation3 + $0x2d0] sm:$0xff]
    %v152 = vld [vmem:[#allocation3 + $0x2d8] sm:$0xff]
    %v153 = vld [vmem:[#allocation3 + $0x2e0] sm:$0xff]
    %v154 = vld [vmem:[#allocation3 + $0x2e8] sm:$0xff]
    %v155 = vld [vmem:[#allocation3 + $0x2f0] sm:$0xff]
    %v156 = vld [vmem:[#allocation3 + $0x2f8] sm:$0xff]
    %v157 = vld [vmem:[%s3] sm:$0x1]
    %v159 = vlaneseq
    %v160 = vshrl.u32 %v159, 7
    %v161 = vsub.s32 0, %v160
    %v162 = vrot.slane %v157, %v161
    %164 = vmatprep.subr.mxu0 0.0
    %165 = vmatpush1.msra.mxu0 %v61
    %166 = vmatprep.subr.mxu0 0.0
    %167 = vmatpush1.msra.mxu0 %v62
    %168 = vmatprep.subr.mxu0 0.0
    %169 = vmatpush1.msra.mxu0 %v63
    %170 = vmatprep.subr.mxu0 0.0
    %171 = vmatpush1.msra.mxu0 %v64
    %172 = vmatprep.subr.mxu0 0.0
    %173 = vmatpush1.msra.mxu0 %v65
    %174 = vmatprep.subr.mxu0 0.0
    %175 = vmatpush1.msra.mxu0 %v66
    %176 = vmatprep.subr.mxu0 0.0
    %177 = vmatpush1.msra.mxu0 %v67
    %178 = vmatprep.subr.mxu0 0.0
    %179 = vmatpush1.msra.mxu0 %v68
    %180 = vmatprep.subr.mxu0 0.0
    %181 = vmatpush1.msra.mxu0 %v69
    %182 = vmatprep.subr.mxu0 0.0
    %183 = vmatpush1.msra.mxu0 %v70
    %184 = vmatprep.subr.mxu0 0.0
    %185 = vmatpush1.msra.mxu0 %v71
    %186 = vmatprep.subr.mxu0 0.0
    %187 = vmatpush1.msra.mxu0 %v72
    %188 = vmatprep.subr.mxu0 0.0
    %189 = vmatpush1.msra.mxu0 %v73
    %190 = vmatprep.subr.mxu0 0.0
    %191 = vmatpush1.msra.mxu0 %v74
    %192 = vmatprep.subr.mxu0 0.0
    %193 = vmatpush1.msra.mxu0 %v75
    %194 = vmatprep.subr.mxu0 0.0
    %195 = vmatpush1.msra.mxu0 %v76
    %196 = vmatprep.subr.mxu0 0.0
    %197 = vmatpush1.msra.mxu0 %v77
    %198 = vmatprep.subr.mxu0 0.0
    %199 = vmatpush1.msra.mxu0 %v78
    %200 = vmatprep.subr.mxu0 0.0
    %201 = vmatpush1.msra.mxu0 %v79
    %202 = vmatprep.subr.mxu0 0.0
    %203 = vmatpush1.msra.mxu0 %v80
    %204 = vmatprep.subr.mxu0 0.0
    %205 = vmatpush1.msra.mxu0 %v81
    %206 = vmatprep.subr.mxu0 0.0
    %207 = vmatpush1.msra.mxu0 %v82
    %208 = vmatprep.subr.mxu0 0.0
    %209 = vmatpush1.msra.mxu0 %v83
    %210 = vmatprep.subr.mxu0 0.0
    %211 = vmatpush1.msra.mxu0 %v84
    %212 = vmatprep.subr.mxu0 0.0
    %213 = vmatpush1.msra.mxu0 %v85
    %214 = vmatprep.subr.mxu0 0.0
    %215 = vmatpush1.msra.mxu0 %v86
    %216 = vmatprep.subr.mxu0 0.0
    %217 = vmatpush1.msra.mxu0 %v87
    %218 = vmatprep.subr.mxu0 0.0
    %219 = vmatpush1.msra.mxu0 %v88
    %220 = vmatprep.subr.mxu0 0.0
    %221 = vmatpush1.msra.mxu0 %v89
    %222 = vmatprep.subr.mxu0 0.0
    %223 = vmatpush1.msra.mxu0 %v90
    %224 = vmatprep.subr.mxu0 0.0
    %225 = vmatpush1.msra.mxu0 %v91
    %226 = vmatprep.subr.mxu0 0.0
    %227 = vmatpush1.msra.mxu0 %v92
    %228 = vmatprep.mubr.f32.mxu0 %v56
    %229 = vmatmul.mubr.f32.gmra.mrb[0].mxu0 %v55
    %v230 = vpop.f32.mrb[0].mxu0
    %v231 = vadd.f32 %v162, %v230
    %v232 = vpop.f32.mrb[0].mxu0
    %233 = vdwg.mxu0
    %234 = vmatprep.subr.mxu0 0.0
    %235 = vmatpush1.msra.mxu0 %v93
    %236 = vmatprep.subr.mxu0 0.0
    %237 = vmatpush1.msra.mxu0 %v94
    %238 = vmatprep.subr.mxu0 0.0
    %239 = vmatpush1.msra.mxu0 %v95
    %240 = vmatprep.subr.mxu0 0.0
    %241 = vmatpush1.msra.mxu0 %v96
    %242 = vmatprep.subr.mxu0 0.0
    %243 = vmatpush1.msra.mxu0 %v97
    %244 = vmatprep.subr.mxu0 0.0
    %245 = vmatpush1.msra.mxu0 %v98
    %246 = vmatprep.subr.mxu0 0.0
    %247 = vmatpush1.msra.mxu0 %v99
    %248 = vmatprep.subr.mxu0 0.0
    %249 = vmatpush1.msra.mxu0 %v100
    %250 = vmatprep.subr.mxu0 0.0
    %251 = vmatpush1.msra.mxu0 %v101
    %252 = vmatprep.subr.mxu0 0.0
    %253 = vmatpush1.msra.mxu0 %v102
    %254 = vmatprep.subr.mxu0 0.0
    %255 = vmatpush1.msra.mxu0 %v103
    %256 = vmatprep.subr.mxu0 0.0
    %257 = vmatpush1.msra.mxu0 %v104
    %258 = vmatprep.subr.mxu0 0.0
    %259 = vmatpush1.msra.mxu0 %v105
    %260 = vmatprep.subr.mxu0 0.0
    %261 = vmatpush1.msra.mxu0 %v106
    %262 = vmatprep.subr.mxu0 0.0
    %263 = vmatpush1.msra.mxu0 %v107
    %264 = vmatprep.subr.mxu0 0.0
    %265 = vmatpush1.msra.mxu0 %v108
    %266 = vmatprep.subr.mxu0 0.0
    %267 = vmatpush1.msra.mxu0 %v109
    %268 = vmatprep.subr.mxu0 0.0
    %269 = vmatpush1.msra.mxu0 %v110
    %270 = vmatprep.subr.mxu0 0.0
    %271 = vmatpush1.msra.mxu0 %v111
    %272 = vmatprep.subr.mxu0 0.0
    %273 = vmatpush1.msra.mxu0 %v112
    %274 = vmatprep.subr.mxu0 0.0
    %275 = vmatpush1.msra.mxu0 %v113
    %276 = vmatprep.subr.mxu0 0.0
    %277 = vmatpush1.msra.mxu0 %v114
    %278 = vmatprep.subr.mxu0 0.0
    %279 = vmatpush1.msra.mxu0 %v115
    %280 = vmatprep.subr.mxu0 0.0
    %281 = vmatpush1.msra.mxu0 %v116
    %282 = vmatprep.subr.mxu0 0.0
    %283 = vmatpush1.msra.mxu0 %v117
    %284 = vmatprep.subr.mxu0 0.0
    %285 = vmatpush1.msra.mxu0 %v118
    %286 = vmatprep.subr.mxu0 0.0
    %287 = vmatpush1.msra.mxu0 %v119
    %288 = vmatprep.subr.mxu0 0.0
    %289 = vmatpush1.msra.mxu0 %v120
    %290 = vmatprep.subr.mxu0 0.0
    %291 = vmatpush1.msra.mxu0 %v121
    %292 = vmatprep.subr.mxu0 0.0
    %293 = vmatpush1.msra.mxu0 %v122
    %294 = vmatprep.subr.mxu0 0.0
    %295 = vmatpush1.msra.mxu0 %v123
    %296 = vmatprep.subr.mxu0 0.0
    %297 = vmatpush1.msra.mxu0 %v124
    %298 = vmatprep.mubr.f32.mxu0 %v58
    %299 = vmatmul.mubr.f32.gmra.mrb[0].mxu0 %v57
    %v300 = vpop.f32.mrb[0].mxu0
    %v301 = vadd.f32 %v231, %v300
    %v302 = vpop.f32.mrb[0].mxu0
    %303 = vdwg.mxu0
    %304 = vmatprep.subr.mxu0 0.0
    %305 = vmatpush1.msra.mxu0 %v125
    %306 = vmatprep.subr.mxu0 0.0
    %307 = vmatpush1.msra.mxu0 %v126
    %308 = vmatprep.subr.mxu0 0.0
    %309 = vmatpush1.msra.mxu0 %v127
    %310 = vmatprep.subr.mxu0 0.0
    %311 = vmatpush1.msra.mxu0 %v128
    %312 = vmatprep.subr.mxu0 0.0
    %313 = vmatpush1.msra.mxu0 %v129
    %314 = vmatprep.subr.mxu0 0.0
    %315 = vmatpush1.msra.mxu0 %v130
    %316 = vmatprep.subr.mxu0 0.0
    %317 = vmatpush1.msra.mxu0 %v131
    %318 = vmatprep.subr.mxu0 0.0
    %319 = vmatpush1.msra.mxu0 %v132
    %320 = vmatprep.subr.mxu0 0.0
    %321 = vmatpush1.msra.mxu0 %v133
    %322 = vmatprep.subr.mxu0 0.0
    %323 = vmatpush1.msra.mxu0 %v134
    %324 = vmatprep.subr.mxu0 0.0
    %325 = vmatpush1.msra.mxu0 %v135
    %326 = vmatprep.subr.mxu0 0.0
    %327 = vmatpush1.msra.mxu0 %v136
    %328 = vmatprep.subr.mxu0 0.0
    %329 = vmatpush1.msra.mxu0 %v137
    %330 = vmatprep.subr.mxu0 0.0
    %331 = vmatpush1.msra.mxu0 %v138
    %332 = vmatprep.subr.mxu0 0.0
    %333 = vmatpush1.msra.mxu0 %v139
    %334 = vmatprep.subr.mxu0 0.0
    %335 = vmatpush1.msra.mxu0 %v140
    %336 = vmatprep.subr.mxu0 0.0
    %337 = vmatpush1.msra.mxu0 %v141
    %338 = vmatprep.subr.mxu0 0.0
    %339 = vmatpush1.msra.mxu0 %v142
    %340 = vmatprep.subr.mxu0 0.0
    %341 = vmatpush1.msra.mxu0 %v143
    %342 = vmatprep.subr.mxu0 0.0
    %343 = vmatpush1.msra.mxu0 %v144
    %344 = vmatprep.subr.mxu0 0.0
    %345 = vmatpush1.msra.mxu0 %v145
    %346 = vmatprep.subr.mxu0 0.0
    %347 = vmatpush1.msra.mxu0 %v146
    %348 = vmatprep.subr.mxu0 0.0
    %349 = vmatpush1.msra.mxu0 %v147
    %350 = vmatprep.subr.mxu0 0.0
    %351 = vmatpush1.msra.mxu0 %v148
    %352 = vmatprep.subr.mxu0 0.0
    %353 = vmatpush1.msra.mxu0 %v149
    %354 = vmatprep.subr.mxu0 0.0
    %355 = vmatpush1.msra.mxu0 %v150
    %356 = vmatprep.subr.mxu0 0.0
    %357 = vmatpush1.msra.mxu0 %v151
    %358 = vmatprep.subr.mxu0 0.0
    %359 = vmatpush1.msra.mxu0 %v152
    %360 = vmatprep.subr.mxu0 0.0
    %361 = vmatpush1.msra.mxu0 %v153
    %362 = vmatprep.subr.mxu0 0.0
    %363 = vmatpush1.msra.mxu0 %v154
    %364 = vmatprep.subr.mxu0 0.0
    %365 = vmatpush1.msra.mxu0 %v155
    %366 = vmatprep.subr.mxu0 0.0
    %367 = vmatpush1.msra.mxu0 %v156
    %368 = vmatprep.mubr.f32.mxu0 %v60
    %369 = vmatmul.mubr.f32.gmra.mrb[0].mxu0 %v59
    %v370 = vpop.f32.mrb[0].mxu0
    %v371 = vadd.f32 %v301, %v370
    %v372 = vpop.f32.mrb[0].mxu0
    %373 = vdwg.mxu0
    %v374 = vld [vmem:[%s4] sm:$0xf]
    %vm375 = vcmask 1043456
    %v376 = vsel %vm375, %v374, 0.0
    %v377 = vrot.slane %v376, 4
    %v378 = vadd.f32 %v376, %v377
    %v379 = vrot.slane %v378, 2
    %v380 = vadd.f32 %v378, %v379
    %v381 = vrot.slane %v380, 1
    %v382 = vadd.f32 %v380, %v381
    %v383 = vld [vmem:[%s5] sm:$0xff]
    %v384 = vld [vmem:[%s5 + $0x8] sm:$0xff]
    %v385 = vld [vmem:[%s5 + $0x10] sm:$0xff]
    %v386 = vld [vmem:[%s5 + $0x18] sm:$0xff]
    %v387 = vld [vmem:[%s5 + $0x20] sm:$0xff]
    %v388 = vld [vmem:[%s5 + $0x28] sm:$0xff]
    %v389 = vld [vmem:[%s5 + $0x30] sm:$0xff]
    %v390 = vld [vmem:[%s5 + $0x38] sm:$0xff]
    %v391 = vld [vmem:[%s5 + $0x40] sm:$0xff]
    %v392 = vld [vmem:[%s5 + $0x48] sm:$0xff]
    %v393 = vld [vmem:[%s5 + $0x50] sm:$0xff]
    %v394 = vld [vmem:[%s5 + $0x58] sm:$0xff]
    %v395 = vld [vmem:[%s5 + $0x60] sm:$0xff]
    %v396 = vld [vmem:[%s5 + $0x68] sm:$0xff]
    %v397 = vld [vmem:[%s5 + $0x70] sm:$0xff]
    %v398 = vld [vmem:[%s5 + $0x78] sm:$0xff]
    %v399 = vadd.f32 %v383, %v382
    %v400 = vadd.f32 %v384, %v382
    %v401 = vadd.f32 %v385, %v382
    %v402 = vadd.f32 %v386, %v382
    %v403 = vadd.f32 %v387, %v382
    %v404 = vadd.f32 %v388, %v382
    %v405 = vadd.f32 %v389, %v382
    %v406 = vadd.f32 %v390, %v382
    %v407 = vadd.f32 %v391, %v382
    %v408 = vadd.f32 %v392, %v382
    %v409 = vadd.f32 %v393, %v382
    %v410 = vadd.f32 %v394, %v382
    %v411 = vadd.f32 %v395, %v382
    %v412 = vadd.f32 %v396, %v382
    %v413 = vadd.f32 %v397, %v382
    %v414 = vadd.f32 %v398, %v382
    %v415 = vmul.f32 %v399, 0.125
    %v416 = vmul.f32 %v400, 0.125
    %v417 = vmul.f32 %v401, 0.125
    %v418 = vmul.f32 %v402, 0.125
    %v419 = vmul.f32 %v403, 0.125
    %v420 = vmul.f32 %v404, 0.125
    %v421 = vmul.f32 %v405, 0.125
    %v422 = vmul.f32 %v406, 0.125
    %v423 = vmul.f32 %v407, 0.125
    %v424 = vmul.f32 %v408, 0.125
    %v425 = vmul.f32 %v409, 0.125
    %v426 = vmul.f32 %v410, 0.125
    %v427 = vmul.f32 %v411, 0.125
    %v428 = vmul.f32 %v412, 0.125
    %v429 = vmul.f32 %v413, 0.125
    %v430 = vmul.f32 %v414, 0.125
    %v431 = vld [vmem:[#allocation5] sm:$0xff]
    %v432 = vld [vmem:[#allocation5 + $0x8] sm:$0xff]
    %v433 = vld [vmem:[#allocation5 + $0x10] sm:$0xff]
    %v434 = vld [vmem:[#allocation5 + $0x18] sm:$0xff]
    %v435 = vld [vmem:[#allocation5 + $0x20] sm:$0xff]
    %v436 = vld [vmem:[#allocation5 + $0x28] sm:$0xff]
    %v437 = vld [vmem:[#allocation5 + $0x30] sm:$0xff]
    %v438 = vld [vmem:[#allocation5 + $0x38] sm:$0xff]
    %v439 = vld [vmem:[#allocation5 + $0x40] sm:$0xff]
    %v440 = vld [vmem:[#allocation5 + $0x48] sm:$0xff]
    %v441 = vld [vmem:[#allocation5 + $0x50] sm:$0xff]
    %v442 = vld [vmem:[#allocation5 + $0x58] sm:$0xff]
    %v443 = vld [vmem:[#allocation5 + $0x60] sm:$0xff]
    %v444 = vld [vmem:[#allocation5 + $0x68] sm:$0xff]
    %v445 = vld [vmem:[#allocation5 + $0x70] sm:$0xff]
    %v446 = vld [vmem:[#allocation5 + $0x78] sm:$0xff]
    %447 = vmatprep.subr.mxu0 0.0
    %448 = vmatpush1.msra.mxu0 %v431
    %449 = vmatprep.subr.mxu0 0.0
    %450 = vmatpush1.msra.mxu0 %v432
    %451 = vmatprep.subr.mxu0 0.0
    %452 = vmatpush1.msra.mxu0 %v433
    %453 = vmatprep.subr.mxu0 0.0
    %454 = vmatpush1.msra.mxu0 %v434
    %455 = vmatprep.subr.mxu0 0.0
    %456 = vmatpush1.msra.mxu0 %v435
    %457 = vmatprep.subr.mxu0 0.0
    %458 = vmatpush1.msra.mxu0 %v436
    %459 = vmatprep.subr.mxu0 0.0
    %460 = vmatpush1.msra.mxu0 %v437
    %461 = vmatprep.subr.mxu0 0.0
    %462 = vmatpush1.msra.mxu0 %v438
    %463 = vmatprep.subr.mxu0 0.0
    %464 = vmatpush1.msra.mxu0 %v439
    %465 = vmatprep.subr.mxu0 0.0
    %466 = vmatpush1.msra.mxu0 %v440
    %467 = vmatprep.subr.mxu0 0.0
    %468 = vmatpush1.msra.mxu0 %v441
    %469 = vmatprep.subr.mxu0 0.0
    %470 = vmatpush1.msra.mxu0 %v442
    %471 = vmatprep.subr.mxu0 0.0
    %472 = vmatpush1.msra.mxu0 %v443
    %473 = vmatprep.subr.mxu0 0.0
    %474 = vmatpush1.msra.mxu0 %v444
    %475 = vmatprep.subr.mxu0 0.0
    %476 = vmatpush1.msra.mxu0 %v445
    %477 = vmatprep.subr.mxu0 0.0
    %478 = vmatpush1.msra.mxu0 %v446
    %479 = vmatprep.subr.mxu0 0.0
    %480 = vmatpush1.msra.mxu0 0.0
    %481 = vmatprep.subr.mxu0 0.0
    %482 = vmatpush1.msra.mxu0 0.0
    %483 = vmatprep.subr.mxu0 0.0
    %484 = vmatpush1.msra.mxu0 0.0
    %485 = vmatprep.subr.mxu0 0.0
    %486 = vmatpush1.msra.mxu0 0.0
    %487 = vmatprep.subr.mxu0 0.0
    %488 = vmatpush1.msra.mxu0 0.0
    %489 = vmatprep.subr.mxu0 0.0
    %490 = vmatpush1.msra.mxu0 0.0
    %491 = vmatprep.subr.mxu0 0.0
    %492 = vmatpush1.msra.mxu0 0.0
    %493 = vmatprep.subr.mxu0 0.0
    %494 = vmatpush1.msra.mxu0 0.0
    %495 = vmatprep.subr.mxu0 0.0
    %496 = vmatpush1.msra.mxu0 0.0
    %497 = vmatprep.subr.mxu0 0.0
    %498 = vmatpush1.msra.mxu0 0.0
    %499 = vmatprep.subr.mxu0 0.0
    %500 = vmatpush1.msra.mxu0 0.0
    %501 = vmatprep.subr.mxu0 0.0
    %502 = vmatpush1.msra.mxu0 0.0
    %503 = vmatprep.subr.mxu0 0.0
    %504 = vmatpush1.msra.mxu0 0.0
    %505 = vmatprep.subr.mxu0 0.0
    %506 = vmatpush1.msra.mxu0 0.0
    %507 = vmatprep.subr.mxu0 0.0
    %508 = vmatpush1.msra.mxu0 0.0
    %509 = vmatprep.subr.mxu0 0.0
    %510 = vmatpush1.msra.mxu0 0.0
    %511 = vmatprep.mubr.f32.mxu0 0.0
    %512 = vmatmul.mubr.f32.gmra.mrb[0].mxu0 %v415
    %v513 = vpop.f32.mrb[0].mxu0
    %v514 = vadd.f32 0.0, %v513
    %v515 = vpop.f32.mrb[0].mxu0
    %516 = vmatprep.mubr.f32.mxu0 0.0
    %517 = vmatmul.mubr.f32.gmra.mrb[0].mxu0 %v416
    %v518 = vpop.f32.mrb[0].mxu0
    %v519 = vadd.f32 0.0, %v518
    %v520 = vpop.f32.mrb[0].mxu0
    %521 = vmatprep.mubr.f32.mxu0 0.0
    %522 = vmatmul.mubr.f32.gmra.mrb[0].mxu0 %v417
    %v523 = vpop.f32.mrb[0].mxu0
    %v524 = vadd.f32 0.0, %v523
    %v525 = vpop.f32.mrb[0].mxu0
    %526 = vmatprep.mubr.f32.mxu0 0.0
    %527 = vmatmul.mubr.f32.gmra.mrb[0].mxu0 %v418
    %v528 = vpop.f32.mrb[0].mxu0
    %v529 = vadd.f32 0.0, %v528
    %v530 = vpop.f32.mrb[0].mxu0
    %531 = vmatprep.mubr.f32.mxu0 0.0
    %532 = vmatmul.mubr.f32.gmra.mrb[0].mxu0 %v419
    %v533 = vpop.f32.mrb[0].mxu0
    %v534 = vadd.f32 0.0, %v533
    %v535 = vpop.f32.mrb[0].mxu0
    %536 = vmatprep.mubr.f32.mxu0 0.0
    %537 = vmatmul.mubr.f32.gmra.mrb[0].mxu0 %v420
    %v538 = vpop.f32.mrb[0].mxu0
    %v539 = vadd.f32 0.0, %v538
    %v540 = vpop.f32.mrb[0].mxu0
    %541 = vmatprep.mubr.f32.mxu0 0.0
    %542 = vmatmul.mubr.f32.gmra.mrb[0].mxu0 %v421
    %v543 = vpop.f32.mrb[0].mxu0
    %v544 = vadd.f32 0.0, %v543
    %v545 = vpop.f32.mrb[0].mxu0
    %546 = vmatprep.mubr.f32.mxu0 0.0
    %547 = vmatmul.mubr.f32.gmra.mrb[0].mxu0 %v422
    %v548 = vpop.f32.mrb[0].mxu0
    %v549 = vadd.f32 0.0, %v548
    %v550 = vpop.f32.mrb[0].mxu0
    %551 = vmatprep.mubr.f32.mxu0 0.0
    %552 = vmatmul.mubr.f32.gmra.mrb[0].mxu0 %v423
    %v553 = vpop.f32.mrb[0].mxu0
    %v554 = vadd.f32 0.0, %v553
    %v555 = vpop.f32.mrb[0].mxu0
    %556 = vmatprep.mubr.f32.mxu0 0.0
    %557 = vmatmul.mubr.f32.gmra.mrb[0].mxu0 %v424
    %v558 = vpop.f32.mrb[0].mxu0
    %v559 = vadd.f32 0.0, %v558
    %v560 = vpop.f32.mrb[0].mxu0
    %561 = vmatprep.mubr.f32.mxu0 0.0
    %562 = vmatmul.mubr.f32.gmra.mrb[0].mxu0 %v425
    %v563 = vpop.f32.mrb[0].mxu0
    %v564 = vadd.f32 0.0, %v563
    %v565 = vpop.f32.mrb[0].mxu0
    %566 = vmatprep.mubr.f32.mxu0 0.0
    %567 = vmatmul.mubr.f32.gmra.mrb[0].mxu0 %v426
    %v568 = vpop.f32.mrb[0].mxu0
    %v569 = vadd.f32 0.0, %v568
    %v570 = vpop.f32.mrb[0].mxu0
    %571 = vmatprep.mubr.f32.mxu0 0.0
    %572 = vmatmul.mubr.f32.gmra.mrb[0].mxu0 %v427
    %v573 = vpop.f32.mrb[0].mxu0
    %v574 = vadd.f32 0.0, %v573
    %v575 = vpop.f32.mrb[0].mxu0
    %576 = vmatprep.mubr.f32.mxu0 0.0
    %577 = vmatmul.mubr.f32.gmra.mrb[0].mxu0 %v428
    %v578 = vpop.f32.mrb[0].mxu0
    %v579 = vadd.f32 0.0, %v578
    %v580 = vpop.f32.mrb[0].mxu0
    %581 = vmatprep.mubr.f32.mxu0 0.0
    %582 = vmatmul.mubr.f32.gmra.mrb[0].mxu0 %v429
    %v583 = vpop.f32.mrb[0].mxu0
    %v584 = vadd.f32 0.0, %v583
    %v585 = vpop.f32.mrb[0].mxu0
    %586 = vmatprep.mubr.f32.mxu0 0.0
    %587 = vmatmul.mubr.f32.gmra.mrb[0].mxu0 %v430
    %v588 = vpop.f32.mrb[0].mxu0
    %v589 = vadd.f32 0.0, %v588
    %v590 = vpop.f32.mrb[0].mxu0
    %591 = vdwg.mxu0
    %v592 = vmul.f32 %v371, %v371
    %593 = vadd.xlane.f32.xlu0 %v592
    %v594 = vpop.xlane.xlu0 %593
    %v595 = vmax.f32 %v594, 1e-30
    %v596 = vrsqrt.pop %v595
    %v597 = vmul.f32 %v371, %v596
    %v598 = vmul.f32 %v514, %v514
    %v599 = vmul.f32 %v519, %v519
    %v600 = vmul.f32 %v524, %v524
    %v601 = vmul.f32 %v529, %v529
    %v602 = vmul.f32 %v534, %v534
    %v603 = vmul.f32 %v539, %v539
    %v604 = vmul.f32 %v544, %v544
    %v605 = vmul.f32 %v549, %v549
    %v606 = vmul.f32 %v554, %v554
    %v607 = vmul.f32 %v559, %v559
    %v608 = vmul.f32 %v564, %v564
    %v609 = vmul.f32 %v569, %v569
    %v610 = vmul.f32 %v574, %v574
    %v611 = vmul.f32 %v579, %v579
    %v612 = vmul.f32 %v584, %v584
    %v613 = vmul.f32 %v589, %v589
    %614 = vadd.xlane.f32.xlu0 %v598
    %v615 = vpop.xlane.xlu0 %614
    %616 = vadd.xlane.f32.xlu0 %v599
    %v617 = vpop.xlane.xlu0 %616
    %618 = vadd.xlane.f32.xlu0 %v600
    %v619 = vpop.xlane.xlu0 %618
    %620 = vadd.xlane.f32.xlu0 %v601
    %v621 = vpop.xlane.xlu0 %620
    %622 = vadd.xlane.f32.xlu0 %v602
    %v623 = vpop.xlane.xlu0 %622
    %624 = vadd.xlane.f32.xlu0 %v603
    %v625 = vpop.xlane.xlu0 %624
    %626 = vadd.xlane.f32.xlu0 %v604
    %v627 = vpop.xlane.xlu0 %626
    %628 = vadd.xlane.f32.xlu0 %v605
    %v629 = vpop.xlane.xlu0 %628
    %630 = vadd.xlane.f32.xlu0 %v606
    %v631 = vpop.xlane.xlu0 %630
    %632 = vadd.xlane.f32.xlu0 %v607
    %v633 = vpop.xlane.xlu0 %632
    %634 = vadd.xlane.f32.xlu0 %v608
    %v635 = vpop.xlane.xlu0 %634
    %636 = vadd.xlane.f32.xlu0 %v609
    %v637 = vpop.xlane.xlu0 %636
    %638 = vadd.xlane.f32.xlu0 %v610
    %v639 = vpop.xlane.xlu0 %638
    %640 = vadd.xlane.f32.xlu0 %v611
    %v641 = vpop.xlane.xlu0 %640
    %642 = vadd.xlane.f32.xlu0 %v612
    %v643 = vpop.xlane.xlu0 %642
    %644 = vadd.xlane.f32.xlu0 %v613
    %v645 = vpop.xlane.xlu0 %644
    %v646 = vmax.f32 %v615, 1e-30
    %v647 = vmax.f32 %v617, 1e-30
    %v648 = vmax.f32 %v619, 1e-30
    %v649 = vmax.f32 %v621, 1e-30
    %v650 = vmax.f32 %v623, 1e-30
    %v651 = vmax.f32 %v625, 1e-30
    %v652 = vmax.f32 %v627, 1e-30
    %v653 = vmax.f32 %v629, 1e-30
    %v654 = vmax.f32 %v631, 1e-30
    %v655 = vmax.f32 %v633, 1e-30
    %v656 = vmax.f32 %v635, 1e-30
    %v657 = vmax.f32 %v637, 1e-30
    %v658 = vmax.f32 %v639, 1e-30
    %v659 = vmax.f32 %v641, 1e-30
    %v660 = vmax.f32 %v643, 1e-30
    %v661 = vmax.f32 %v645, 1e-30
    %v662 = vrsqrt.pop %v646
    %v663 = vrsqrt.pop %v647
    %v664 = vrsqrt.pop %v648
    %v665 = vrsqrt.pop %v649
    %v666 = vrsqrt.pop %v650
    %v667 = vrsqrt.pop %v651
    %v668 = vrsqrt.pop %v652
    %v669 = vrsqrt.pop %v653
    %v670 = vrsqrt.pop %v654
    %v671 = vrsqrt.pop %v655
    %v672 = vrsqrt.pop %v656
    %v673 = vrsqrt.pop %v657
    %v674 = vrsqrt.pop %v658
    %v675 = vrsqrt.pop %v659
    %v676 = vrsqrt.pop %v660
    %v677 = vrsqrt.pop %v661
    %v678 = vmul.f32 %v514, %v662
    %v679 = vmul.f32 %v519, %v663
    %v680 = vmul.f32 %v524, %v664
    %v681 = vmul.f32 %v529, %v665
    %v682 = vmul.f32 %v534, %v666
    %v683 = vmul.f32 %v539, %v667
    %v684 = vmul.f32 %v544, %v668
    %v685 = vmul.f32 %v549, %v669
    %v686 = vmul.f32 %v554, %v670
    %v687 = vmul.f32 %v559, %v671
    %v688 = vmul.f32 %v564, %v672
    %v689 = vmul.f32 %v569, %v673
    %v690 = vmul.f32 %v574, %v674
    %v691 = vmul.f32 %v579, %v675
    %v692 = vmul.f32 %v584, %v676
    %v693 = vmul.f32 %v589, %v677
    %694 = vmatprep.subr.mxu0 0.0
    %695 = vmatpush1.xpose.msra.mxu0 %v678
    %696 = vmatprep.subr.mxu0 0.0
    %697 = vmatpush1.xpose.msra.mxu0 %v679
    %698 = vmatprep.subr.mxu0 0.0
    %699 = vmatpush1.xpose.msra.mxu0 %v680
    %700 = vmatprep.subr.mxu0 0.0
    %701 = vmatpush1.xpose.msra.mxu0 %v681
    %702 = vmatprep.subr.mxu0 0.0
    %703 = vmatpush1.xpose.msra.mxu0 %v682
    %704 = vmatprep.subr.mxu0 0.0
    %705 = vmatpush1.xpose.msra.mxu0 %v683
    %706 = vmatprep.subr.mxu0 0.0
    %707 = vmatpush1.xpose.msra.mxu0 %v684
    %708 = vmatprep.subr.mxu0 0.0
    %709 = vmatpush1.xpose.msra.mxu0 %v685
    %710 = vmatprep.subr.mxu0 0.0
    %711 = vmatpush1.xpose.msra.mxu0 %v686
    %712 = vmatprep.subr.mxu0 0.0
    %713 = vmatpush1.xpose.msra.mxu0 %v687
    %714 = vmatprep.subr.mxu0 0.0
    %715 = vmatpush1.xpose.msra.mxu0 %v688
    %716 = vmatprep.subr.mxu0 0.0
    %717 = vmatpush1.xpose.msra.mxu0 %v689
    %718 = vmatprep.subr.mxu0 0.0
    %719 = vmatpush1.xpose.msra.mxu0 %v690
    %720 = vmatprep.subr.mxu0 0.0
    %721 = vmatpush1.xpose.msra.mxu0 %v691
    %722 = vmatprep.subr.mxu0 0.0
    %723 = vmatpush1.xpose.msra.mxu0 %v692
    %724 = vmatprep.subr.mxu0 0.0
    %725 = vmatpush1.xpose.msra.mxu0 %v693
    %726 = vmatprep.subr.mxu0 0.0
    %727 = vmatpush1.xpose.msra.mxu0 0.0
    %728 = vmatprep.subr.mxu0 0.0
    %729 = vmatpush1.xpose.msra.mxu0 0.0
    %730 = vmatprep.subr.mxu0 0.0
    %731 = vmatpush1.xpose.msra.mxu0 0.0
    %732 = vmatprep.subr.mxu0 0.0
    %733 = vmatpush1.xpose.msra.mxu0 0.0
    %734 = vmatprep.subr.mxu0 0.0
    %735 = vmatpush1.xpose.msra.mxu0 0.0
    %736 = vmatprep.subr.mxu0 0.0
    %737 = vmatpush1.xpose.msra.mxu0 0.0
    %738 = vmatprep.subr.mxu0 0.0
    %739 = vmatpush1.xpose.msra.mxu0 0.0
    %740 = vmatprep.subr.mxu0 0.0
    %741 = vmatpush1.xpose.msra.mxu0 0.0
    %742 = vmatprep.subr.mxu0 0.0
    %743 = vmatpush1.xpose.msra.mxu0 0.0
    %744 = vmatprep.subr.mxu0 0.0
    %745 = vmatpush1.xpose.msra.mxu0 0.0
    %746 = vmatprep.subr.mxu0 0.0
    %747 = vmatpush1.xpose.msra.mxu0 0.0
    %748 = vmatprep.subr.mxu0 0.0
    %749 = vmatpush1.xpose.msra.mxu0 0.0
    %750 = vmatprep.subr.mxu0 0.0
    %751 = vmatpush1.xpose.msra.mxu0 0.0
    %752 = vmatprep.subr.mxu0 0.0
    %753 = vmatpush1.xpose.msra.mxu0 0.0
    %754 = vmatprep.subr.mxu0 0.0
    %755 = vmatpush1.xpose.msra.mxu0 0.0
    %756 = vmatprep.subr.mxu0 0.0
    %757 = vmatpush1.xpose.msra.mxu0 0.0
    %758 = vmatprep.mubr.f32.mxu0 0.0
    %759 = vmatmul.mubr.f32.gmra.mrb[0].mxu0 %v597
    %v760 = vpop.f32.mrb[0].mxu0
    %v761 = vadd.f32 0.0, %v760
    %v762 = vpop.f32.mrb[0].mxu0
    %763 = vdwg.mxu0
    %s764 = sld [smem:[#allocation2]]
    %v765 = vstv %s764
    %v766 = vmul.f32 %v765, %v761
    %767 = vst [vmem:[%s7] sm:$0xff] %v766
    // Predicated region
    $region38: #{clip_ttt_forward.1} parent=1 // pred_check
      _
    $region39: #{clip_ttt_forward.1} parent=1 // pred_check_branch
      %769 = sbr.rel (0) target = $region41
    $region40: #{clip_ttt_forward.1} parent=1 // pred_region
      _
    $region41: #{clip_ttt_forward.1} parent=1 // pred_fallthru
      _
    // Predicated region
    $region42: #{clip_ttt_forward.1} parent=1 // pred_check
      _
    $region43: #{clip_ttt_forward.1} parent=1 // pred_check_branch
      %771 = sbr.rel (0) target = $region45
    $region44: #{clip_ttt_forward.1} parent=1 // pred_region
      _
    $region45: #{clip_ttt_forward.1} parent=1 // pred_fallthru
      _
    %772 = vsyncpa [#allocation4], 1
    %773 = vsyncpa [#allocation6], 1

</llo_original>
